<compile_context>
chip_gen: v7x
topology: tpu7x:2x2x1
jax: 0.10.0
libtpu: 0.0.40
codegen_flags: <defaults>
</compile_context>

<pallas_src>
import jax
import jax.numpy as jnp
from jax.experimental import pallas as pl
from jax.experimental.pallas import tpu as pltpu

D_IN, H1, H2, D_OUT = 4, 64, 32, 1


def _round_up(x, m):
    return ((x + m - 1) // m) * m


def _mlp_kernel(x_ref, w1_ref, b1_ref, w2_ref, b2_ref, w3_ref, b3_ref, o_ref):
    # Feature-major: x_ref is [D_IN, tile] with the batch on the lane axis.
    x = x_ref[...]
    w1 = w1_ref[...]
    w2 = w2_ref[...]
    w3 = w3_ref[...]
    cdt = w1.dtype  # MXU compute dtype (bf16 by default, f32 for exact mode)

    # fc1 + ReLU   ([64, 4] @ [4, tile] -> [64, tile], f32 accumulation)
    h = jnp.dot(w1, x, preferred_element_type=jnp.float32)
    h = jnp.maximum(h + b1_ref[...], 0.0)

    # dropout(p=0.2) -> identity (eval mode).
    # TODO(synk): training-mode dropout mask not emitted.

    # fc2 + ReLU   ([32, 64] @ [64, tile] -> [32, tile])
    h = jnp.dot(w2, h.astype(cdt), preferred_element_type=jnp.float32)
    h = jnp.maximum(h + b2_ref[...], 0.0)

    # fc3          ([1, 32] @ [32, tile] -> [1, tile]); lane-dense output store.
    y = jnp.dot(w3, h.astype(cdt), preferred_element_type=jnp.float32)
    o_ref[...] = (y + b3_ref[0, 0]).astype(o_ref.dtype)


def regression_nn_forward_fm(xT, params, *, batch_tile=16384,
                             compute_dtype=jnp.bfloat16):
    """Feature-major entry point.

    xT: [4, B] (batch on the lane axis).  Returns [1, B] float32.
    """
    D, B = xT.shape
    if D != D_IN:
        raise ValueError(f"expected leading dim {D_IN}, got {D}")

    # PyTorch-layout weights [out, in]; biases [out, 1].
    w1 = params["w1"].astype(compute_dtype)           # [64, 4]
    w2 = params["w2"].astype(compute_dtype)           # [32, 64]
    w3 = params["w3"].astype(compute_dtype)           # [1, 32]
    b1 = params["b1"].astype(jnp.float32)              # [64, 1]
    b2 = params["b2"].astype(jnp.float32)              # [32, 1]
    b3 = params["b3"].astype(jnp.float32).reshape(1, 1)  # scalar -> SMEM
    xT = xT.astype(compute_dtype)

    # --- tile / grid selection ------------------------------------------------
    # Tiny batches: one step, block == full array (no 128-divisibility needed).
    # Otherwise: ensure >= 2 parallel steps (v7x has 2 TensorCores) and cap the
    # tile at batch_tile (VMEM working set ~0.5 KiB per batch column).
    if B <= 256:
        tile = B
    else:
        assert batch_tile % 128 == 0, "batch_tile must be a multiple of 128"
        tile = min(batch_tile, _round_up(pl.cdiv(B, 2), 128))
    grid = (pl.cdiv(B, tile),)
    # No jnp.pad: the ragged edge block is masked by Pallas on writeback, and
    # every output column depends only on its own input column.

    # Weights/biases are tiny: keep them fully VMEM-resident (block = array).
    full_vmem = lambda a: pl.BlockSpec(a.shape, lambda i: (0, 0))

    flops = 2 * B * (D_IN * H1 + H1 * H2 + H2 * D_OUT)
    bytes_accessed = (
        B * (D_IN * xT.dtype.itemsize + D_OUT * 4)
        + sum(int(a.size) * a.dtype.itemsize for a in (w1, b1, w2, b2, w3, b3))
    )

    yT = pl.pallas_call(
        _mlp_kernel,
        out_shape=jax.ShapeDtypeStruct((D_OUT, B), jnp.float32),
        grid=grid,
        in_specs=[
            pl.BlockSpec((D_IN, tile), lambda i: (0, i)),        # x tile
            full_vmem(w1), full_vmem(b1),
            full_vmem(w2), full_vmem(b2),
            full_vmem(w3),
            pl.BlockSpec(memory_space=pltpu.MemorySpace.SMEM),   # b3 scalar
        ],
        out_specs=pl.BlockSpec((D_OUT, tile), lambda i: (0, i)),
        compiler_params=pltpu.CompilerParams(
            dimension_semantics=("parallel",),     # shard grid across v7x's 2 TCs
            vmem_limit_bytes=48 * 1024 * 1024,     # big tiles fit v5e too
        ),
        cost_estimate=pl.CostEstimate(
            flops=flops, transcendentals=0, bytes_accessed=bytes_accessed),
    )(xT, w1, b1, w2, b2, w3, b3)

    return yT  # [1, B]


def regression_nn_forward(x, params, *, batch_tile=16384,
                          compute_dtype=jnp.bfloat16):
    """Module-faithful entry point.  x: [B, 4] float32.  Returns [B, 1] float32."""
    B = x.shape[0]
    # Single fused relayout + downcast (transpose and convert fuse into one XLA
    # op); callers with feature-major data should call regression_nn_forward_fm.
    xT = x.astype(compute_dtype).T                       # [4, B]
    yT = regression_nn_forward_fm(xT, params, batch_tile=batch_tile,
                                  compute_dtype=compute_dtype)
    return yT.reshape(B, D_OUT)  # [1, B] -> [B, 1] is a free row-major reshape


def init_params(key):
    """Deterministic init matching nn.Linear ([out, in] weights, [out, 1] biases)."""
    ks = jax.random.split(key, 6)

    def lin(kw, kb, fan_in, fan_out):
        bound = 1.0 / jnp.sqrt(fan_in)
        w = jax.random.uniform(kw, (fan_out, fan_in), jnp.float32, -bound, bound)
        b = jax.random.uniform(kb, (fan_out, 1), jnp.float32, -bound, bound)
        return w, b

    w1, b1 = lin(ks[0], ks[1], D_IN, H1)
    w2, b2 = lin(ks[2], ks[3], H1, H2)
    w3, b3 = lin(ks[4], ks[5], H2, D_OUT)
    return {"w1": w1, "b1": b1, "w2": w2, "b2": b2, "w3": w3, "b3": b3}


def _reference_f32(x, p):
    h = jnp.maximum(x @ p["w1"].T + p["b1"].T, 0.0)
    h = jnp.maximum(h @ p["w2"].T + p["b2"].T, 0.0)
    return h @ p["w3"].T + p["b3"].T


def _reference_mixed(x, p, dtype):
    """Mirrors the kernel's precision policy: bf16 operands, f32 accumulation."""
    w1 = p["w1"].astype(dtype)
    w2 = p["w2"].astype(dtype)
    w3 = p["w3"].astype(dtype)
    h = jnp.dot(x.astype(dtype), w1.T, preferred_element_type=jnp.float32) + p["b1"].T
    h = jnp.maximum(h, 0.0)
    h = jnp.dot(h.astype(dtype), w2.T, preferred_element_type=jnp.float32) + p["b2"].T
    h = jnp.maximum(h, 0.0)
    return jnp.dot(h.astype(dtype), w3.T, preferred_element_type=jnp.float32) + p["b3"].T


if __name__ == "__main__":
    key = jax.random.PRNGKey(0)
    kx, kp, kx2 = jax.random.split(key, 3)
    params = init_params(kp)

    # 1) Tiny batch, f32 compute: single-step grid; exactness vs f32 reference.
    B = 8
    x = jax.random.normal(kx, (B, D_IN), dtype=jnp.float32)
    out = jax.block_until_ready(
        regression_nn_forward(x, params, compute_dtype=jnp.float32))
    ref = _reference_f32(x, params)
    assert out.shape == (B, D_OUT), out.shape
    assert jnp.allclose(out, ref, atol=1e-5, rtol=1e-5), "f32 mismatch (B=8)"

    # 2) Larger batch, default bf16 compute: 2-step parallel grid with a masked
    #    ragged edge block (300 = 256 + 44), no padding in HBM.
    B2 = 300
    x2 = jax.random.normal(kx2, (B2, D_IN), dtype=jnp.float32)
    out2 = jax.block_until_ready(regression_nn_forward(x2, params))
    assert out2.shape == (B2, D_OUT), out2.shape
    ref2_mixed = _reference_mixed(x2, params, jnp.bfloat16)
    ref2_f32 = _reference_f32(x2, params)
    assert jnp.allclose(out2, ref2_mixed, atol=5e-3, rtol=5e-3), \
        "bf16 kernel mismatch vs mixed-precision reference (B=300)"
    assert jnp.allclose(out2, ref2_f32, atol=1e-1, rtol=1e-1), \
        "bf16 kernel drifted too far from f32 reference (B=300)"

    print("KERNEL_OK")
</pallas_src>

<mosaic_0001>
module attributes {stable_mosaic.version = 11 : i64} {
  func.func @_mlp_kernel(%arg0: i32, %arg1: memref<4x8xf32, #tpu.memory_space<vmem>>, %arg2: memref<64x4xf32, #tpu.memory_space<vmem>>, %arg3: memref<64x1xf32, #tpu.memory_space<vmem>>, %arg4: memref<32x64xf32, #tpu.memory_space<vmem>>, %arg5: memref<32x1xf32, #tpu.memory_space<vmem>>, %arg6: memref<1x32xf32, #tpu.memory_space<vmem>>, %arg7: memref<1x1xf32, #tpu.memory_space<smem>>, %arg8: memref<1x8xf32, #tpu.memory_space<vmem>>) attributes {dimension_semantics = [#tpu.dimension_semantics<parallel>], iteration_bounds = array<i64: 1>, scalar_prefetch = 0 : i64, scratch_operands = 0 : i64, tpu.core_type = #tpu.core_type<tc>, window_params = [{transform_indices = @transform_0, window_bounds = array<i64: 4, 8>}, {pipeline_mode = #tpu.pipeline_mode<synchronous>, transform_indices = @transform_1, window_bounds = array<i64: 64, 4>}, {pipeline_mode = #tpu.pipeline_mode<synchronous>, transform_indices = @transform_2, window_bounds = array<i64: 64, 1>}, {pipeline_mode = #tpu.pipeline_mode<synchronous>, transform_indices = @transform_3, window_bounds = array<i64: 32, 64>}, {pipeline_mode = #tpu.pipeline_mode<synchronous>, transform_indices = @transform_4, window_bounds = array<i64: 32, 1>}, {pipeline_mode = #tpu.pipeline_mode<synchronous>, transform_indices = @transform_5, window_bounds = array<i64: 1, 32>}, {transform_indices = @transform_6, window_bounds = array<i64: 1, 1>}, {transform_indices = @transform_7, window_bounds = array<i64: 1, 8>}]} {
    %c0 = arith.constant 0 : index
    %c0_0 = arith.constant 0 : index
    %0 = vector.load %arg1[%c0, %c0_0] : memref<4x8xf32, #tpu.memory_space<vmem>>, vector<4x8xf32>
    %c0_1 = arith.constant 0 : index
    %c0_2 = arith.constant 0 : index
    %1 = vector.load %arg2[%c0_1, %c0_2] : memref<64x4xf32, #tpu.memory_space<vmem>>, vector<64x4xf32>
    %c0_3 = arith.constant 0 : index
    %c0_4 = arith.constant 0 : index
    %2 = vector.load %arg4[%c0_3, %c0_4] : memref<32x64xf32, #tpu.memory_space<vmem>>, vector<32x64xf32>
    %c0_5 = arith.constant 0 : index
    %c0_6 = arith.constant 0 : index
    %3 = vector.load %arg6[%c0_5, %c0_6] : memref<1x32xf32, #tpu.memory_space<vmem>>, vector<1x32xf32>
    %cst = arith.constant dense<0.000000e+00> : vector<64x8xf32>
    %4 = tpu.matmul %1, %0, %cst {dimension_numbers = #tpu.dot_dimension_numbers<[1], [0], [0], [1], [0, 0, 1, 1], [], []>} : vector<64x4xf32>, vector<4x8xf32>, vector<64x8xf32> -> vector<64x8xf32>
    %c0_7 = arith.constant 0 : index
    %c0_8 = arith.constant 0 : index
    %5 = vector.load %arg3[%c0_7, %c0_8] : memref<64x1xf32, #tpu.memory_space<vmem>>, vector<64x1xf32>
    %6 = vector.broadcast %5 : vector<64x1xf32> to vector<64x8xf32>
    %7 = arith.addf %4, %6 : vector<64x8xf32>
    %cst_9 = arith.constant 0.000000e+00 : f32
    %8 = vector.broadcast %cst_9 : f32 to vector<64x8xf32>
    %9 = arith.maximumf %7, %8 : vector<64x8xf32>
    %cst_10 = arith.constant dense<0.000000e+00> : vector<32x8xf32>
    %10 = tpu.matmul %2, %9, %cst_10 {dimension_numbers = #tpu.dot_dimension_numbers<[1], [0], [0], [1], [0, 0, 1, 1], [], []>} : vector<32x64xf32>, vector<64x8xf32>, vector<32x8xf32> -> vector<32x8xf32>
    %c0_11 = arith.constant 0 : index
    %c0_12 = arith.constant 0 : index
    %11 = vector.load %arg5[%c0_11, %c0_12] : memref<32x1xf32, #tpu.memory_space<vmem>>, vector<32x1xf32>
    %12 = vector.broadcast %11 : vector<32x1xf32> to vector<32x8xf32>
    %13 = arith.addf %10, %12 : vector<32x8xf32>
    %cst_13 = arith.constant 0.000000e+00 : f32
    %14 = vector.broadcast %cst_13 : f32 to vector<32x8xf32>
    %15 = arith.maximumf %13, %14 : vector<32x8xf32>
    %cst_14 = arith.constant dense<0.000000e+00> : vector<1x8xf32>
    %16 = tpu.matmul %3, %15, %cst_14 {dimension_numbers = #tpu.dot_dimension_numbers<[1], [0], [0], [1], [0, 0, 1, 1], [], []>} : vector<1x32xf32>, vector<32x8xf32>, vector<1x8xf32> -> vector<1x8xf32>
    %c0_15 = arith.constant 0 : index
    %c0_16 = arith.constant 0 : index
    %17 = memref.load %arg7[%c0_15, %c0_16] : memref<1x1xf32, #tpu.memory_space<smem>>
    %18 = vector.broadcast %17 : f32 to vector<1x8xf32>
    %19 = arith.addf %16, %18 : vector<1x8xf32>
    %c0_17 = arith.constant 0 : index
    %c0_18 = arith.constant 0 : index
    %20 = vector.load %arg8[%c0_17, %c0_18] : memref<1x8xf32, #tpu.memory_space<vmem>>, vector<1x8xf32>
    tpu.vector_store %arg8[%c0_17, %c0_18], %19 {strides = array<i32>} : memref<1x8xf32, #tpu.memory_space<vmem>>, vector<1x8xf32>,
    return
  }
  func.func @transform_0(%arg0: i32) -> (i32, i32) {
    %c0_i32 = arith.constant 0 : i32
    %c0_i32_0 = arith.constant 0 : i32
    return %c0_i32, %arg0 : i32, i32
  }
  func.func @transform_1(%arg0: i32) -> (i32, i32) {
    %c0_i32 = arith.constant 0 : i32
    %c0_i32_0 = arith.constant 0 : i32
    %c0_i32_1 = arith.constant 0 : i32
    return %c0_i32, %c0_i32_0 : i32, i32
  }
  func.func @transform_2(%arg0: i32) -> (i32, i32) {
    %c0_i32 = arith.constant 0 : i32
    %c0_i32_0 = arith.constant 0 : i32
    %c0_i32_1 = arith.constant 0 : i32
    return %c0_i32, %c0_i32_0 : i32, i32
  }
  func.func @transform_3(%arg0: i32) -> (i32, i32) {
    %c0_i32 = arith.constant 0 : i32
    %c0_i32_0 = arith.constant 0 : i32
    %c0_i32_1 = arith.constant 0 : i32
    return %c0_i32, %c0_i32_0 : i32, i32
  }
  func.func @transform_4(%arg0: i32) -> (i32, i32) {
    %c0_i32 = arith.constant 0 : i32
    %c0_i32_0 = arith.constant 0 : i32
    %c0_i32_1 = arith.constant 0 : i32
    return %c0_i32, %c0_i32_0 : i32, i32
  }
  func.func @transform_5(%arg0: i32) -> (i32, i32) {
    %c0_i32 = arith.constant 0 : i32
    %c0_i32_0 = arith.constant 0 : i32
    %c0_i32_1 = arith.constant 0 : i32
    return %c0_i32, %c0_i32_0 : i32, i32
  }
  func.func @transform_6(%arg0: i32) -> (i32, i32) {
    %c0_i32 = arith.constant 0 : i32
    %c0_i32_0 = arith.constant 0 : i32
    %c0_i32_1 = arith.constant 0 : i32
    return %c0_i32, %c0_i32_0 : i32, i32
  }
  func.func @transform_7(%arg0: i32) -> (i32, i32) {
    %c0_i32 = arith.constant 0 : i32
    %c0_i32_0 = arith.constant 0 : i32
    return %c0_i32, %arg0 : i32, i32
  }
}

</mosaic_0001>

<llo_original>
// kernel: tpu_custom_call.1
$region0: #{tpu_custom_call.1}
  #allocation0 [shape = 'u32[]', space=smem, size = 0x4, offset = 0x4, fixed_abs, tag = 'smem constant byte address 0x4 - core index']
  #allocation1 [shape = 'u32[144,128]{1,0:T(1,128)}', space=vmem, size = 0x12000, scoped, tag = 'internal scratch']
  #allocation2 [shape = 'f32[1,1]{1,0:T(1,128)S(6)}', space=smem, size = 0x200, scoped, tag = 'scoped memory for tpu_custom_call.1']
  %s0 = inlined_call_operand.vmem [shape: f32[4,8], index: 0, kind: input, shape index: {}]
  %s1 = inlined_call_operand.vmem [shape: f32[64,4], index: 1, kind: input, shape index: {}]
  %s2 = inlined_call_operand.vmem [shape: f32[64,1], index: 2, kind: input, shape index: {}]
  %s3 = inlined_call_operand.vmem [shape: f32[32,64], index: 3, kind: input, shape index: {}]
  %s4 = inlined_call_operand.vmem [shape: f32[32,1], index: 4, kind: input, shape index: {}]
  %s5 = inlined_call_operand.vmem [shape: f32[1,32], index: 5, kind: input, shape index: {}]
  %s6 = inlined_call_operand.<no memory space> [shape: f32[1,1], index: 6, kind: input, shape index: {}]
  %s7 = inlined_call_operand.hbm [shape: f32[1,8], index: 7, kind: output, shape index: {}]
  %s8 = sld [smem:[#allocation0]]
  $region38: #{tpu_custom_call.1} parent=0
    _
  %s10 = ssub.s32 1, %s8
  %s11 = scalar_select 0, %s10, %s8
  %12 = sst [smem:[#allocation2]] %s6
  $region1: #{tpu_custom_call.1} parent=0
    #allocation3 [shape = 'u8[512]{0}', space=vmem, size = 0x400, scoped, tag = 'output window, operand 0, single buffered']
    #allocation4 [shape = 's32[1]{0}', space=sflag, size = 0x4, scoped, tag = 'scoped memory for tpu_custom_call.1']
    %13 = vsyncpa [#allocation4], 0
    // Predicated region
    $region2: #{tpu_custom_call.1} parent=1 // pred_check
      _
    $region3: #{tpu_custom_call.1} parent=1 // pred_check_branch
      %15 = sbr.rel (0) target = $region5
    $region4: #{tpu_custom_call.1} parent=1 // pred_region
      _
    $region5: #{tpu_custom_call.1} parent=1 // pred_fallthru
      _
    // Predicated region
    $region6: #{tpu_custom_call.1} parent=1 // pred_check
      _
    $region7: #{tpu_custom_call.1} parent=1 // pred_check_branch
      %17 = sbr.rel (0) target = $region9
    $region8: #{tpu_custom_call.1} parent=1 // pred_region
      _
    $region9: #{tpu_custom_call.1} parent=1 // pred_fallthru
      _
    // Predicated region
    $region10: #{tpu_custom_call.1} parent=1 // pred_check
      _
    $region11: #{tpu_custom_call.1} parent=1 // pred_check_branch
      %19 = sbr.rel (0) target = $region13
    $region12: #{tpu_custom_call.1} parent=1 // pred_region
      _
    $region13: #{tpu_custom_call.1} parent=1 // pred_fallthru
      _
    // Predicated region
    $region14: #{tpu_custom_call.1} parent=1 // pred_check
      _
    $region15: #{tpu_custom_call.1} parent=1 // pred_check_branch
      %21 = sbr.rel (0) target = $region17
    $region16: #{tpu_custom_call.1} parent=1 // pred_region
      _
    $region17: #{tpu_custom_call.1} parent=1 // pred_fallthru
      _
    // Predicated region
    $region18: #{tpu_custom_call.1} parent=1 // pred_check
      _
    $region19: #{tpu_custom_call.1} parent=1 // pred_check_branch
      %23 = sbr.rel (0) target = $region21
    $region20: #{tpu_custom_call.1} parent=1 // pred_region
      _
    $region21: #{tpu_custom_call.1} parent=1 // pred_fallthru
      _
    // Predicated region
    $region22: #{tpu_custom_call.1} parent=1 // pred_check
      _
    $region23: #{tpu_custom_call.1} parent=1 // pred_check_branch
      %25 = sbr.rel (0) target = $region25
    $region24: #{tpu_custom_call.1} parent=1 // pred_region
      _
    $region25: #{tpu_custom_call.1} parent=1 // pred_fallthru
      _
    // Predicated region
    $region26: #{tpu_custom_call.1} parent=1 // pred_check
      _
    $region27: #{tpu_custom_call.1} parent=1 // pred_check_branch
      %27 = sbr.rel (0) target = $region29
    $region28: #{tpu_custom_call.1} parent=1 // pred_region
      _
    $region29: #{tpu_custom_call.1} parent=1 // pred_fallthru
      _
    %v28 = vld [vmem:[%s0] sm:$0xf]
    %v29 = vld [vmem:[%s1] sm:$0xff]
    %v30 = vld [vmem:[%s1 + $0x8] sm:$0xff]
    %v31 = vld [vmem:[%s1 + $0x10] sm:$0xff]
    %v32 = vld [vmem:[%s1 + $0x18] sm:$0xff]
    %v33 = vld [vmem:[%s1 + $0x20] sm:$0xff]
    %v34 = vld [vmem:[%s1 + $0x28] sm:$0xff]
    %v35 = vld [vmem:[%s1 + $0x30] sm:$0xff]
    %v36 = vld [vmem:[%s1 + $0x38] sm:$0xff]
    %v37 = vld [vmem:[%s3] sm:$0xff]
    %v38 = vld [vmem:[%s3 + $0x8] sm:$0xff]
    %v39 = vld [vmem:[%s3 + $0x10] sm:$0xff]
    %v40 = vld [vmem:[%s3 + $0x18] sm:$0xff]
    %v41 = vld [vmem:[%s5] sm:$0x1]
    %v42 = vld [vmem:[%s2] sm:$0xff]
    %v43 = vld [vmem:[%s2 + $0x8] sm:$0xff]
    %v44 = vld [vmem:[%s2 + $0x10] sm:$0xff]
    %v45 = vld [vmem:[%s2 + $0x18] sm:$0xff]
    %v46 = vld [vmem:[%s2 + $0x20] sm:$0xff]
    %v47 = vld [vmem:[%s2 + $0x28] sm:$0xff]
    %v48 = vld [vmem:[%s2 + $0x30] sm:$0xff]
    %v49 = vld [vmem:[%s2 + $0x38] sm:$0xff]
    %51 = vset.pattern.permute.xlu0 0
    %52 = vperm.xlu0 %51, %v42
    %v53 = vpop.permute.xlu0 %52
    %56 = vset.pattern.permute.xlu0 0
    %57 = vperm.xlu0 %56, %v43
    %v58 = vpop.permute.xlu0 %57
    %61 = vset.pattern.permute.xlu0 0
    %62 = vperm.xlu0 %61, %v44
    %v63 = vpop.permute.xlu0 %62
    %66 = vset.pattern.permute.xlu0 0
    %67 = vperm.xlu0 %66, %v45
    %v68 = vpop.permute.xlu0 %67
    %71 = vset.pattern.permute.xlu0 0
    %72 = vperm.xlu0 %71, %v46
    %v73 = vpop.permute.xlu0 %72
    %76 = vset.pattern.permute.xlu0 0
    %77 = vperm.xlu0 %76, %v47
    %v78 = vpop.permute.xlu0 %77
    %81 = vset.pattern.permute.xlu0 0
    %82 = vperm.xlu0 %81, %v48
    %v83 = vpop.permute.xlu0 %82
    %86 = vset.pattern.permute.xlu0 0
    %87 = vperm.xlu0 %86, %v49
    %v88 = vpop.permute.xlu0 %87
    %vm90 = vcmask 31744
    %v92 = vsel %vm90, %v29, 0
    %v95 = vsel %vm90, %v30, 0
    %v98 = vsel %vm90, %v31, 0
    %v101 = vsel %vm90, %v32, 0
    %v104 = vsel %vm90, %v33, 0
    %v107 = vsel %vm90, %v34, 0
    %v110 = vsel %vm90, %v35, 0
    %v113 = vsel %vm90, %v36, 0
    %vm115 = vcmask 1043456
    %v117 = vsel %vm115, %v28, 0
    %119 = vmatprep.subr.mxu0 0.0
    %120 = vmatpush1.msra.mxu0 %v117
    %121 = vmatprep.subr.mxu0 0.0
    %122 = vmatpush1.msra.mxu0 0.0
    %123 = vmatprep.subr.mxu0 0.0
    %124 = vmatpush1.msra.mxu0 0.0
    %125 = vmatprep.subr.mxu0 0.0
    %126 = vmatpush1.msra.mxu0 0.0
    %127 = vmatprep.subr.mxu0 0.0
    %128 = vmatpush1.msra.mxu0 0.0
    %129 = vmatprep.subr.mxu0 0.0
    %130 = vmatpush1.msra.mxu0 0.0
    %131 = vmatprep.subr.mxu0 0.0
    %132 = vmatpush1.msra.mxu0 0.0
    %133 = vmatprep.subr.mxu0 0.0
    %134 = vmatpush1.msra.mxu0 0.0
    %135 = vmatprep.subr.mxu0 0.0
    %136 = vmatpush1.msra.mxu0 0.0
    %137 = vmatprep.subr.mxu0 0.0
    %138 = vmatpush1.msra.mxu0 0.0
    %139 = vmatprep.subr.mxu0 0.0
    %140 = vmatpush1.msra.mxu0 0.0
    %141 = vmatprep.subr.mxu0 0.0
    %142 = vmatpush1.msra.mxu0 0.0
    %143 = vmatprep.subr.mxu0 0.0
    %144 = vmatpush1.msra.mxu0 0.0
    %145 = vmatprep.subr.mxu0 0.0
    %146 = vmatpush1.msra.mxu0 0.0
    %147 = vmatprep.subr.mxu0 0.0
    %148 = vmatpush1.msra.mxu0 0.0
    %149 = vmatprep.subr.mxu0 0.0
    %150 = vmatpush1.msra.mxu0 0.0
    %151 = vmatprep.subr.mxu0 0.0
    %152 = vmatpush1.msra.mxu0 0.0
    %153 = vmatprep.subr.mxu0 0.0
    %154 = vmatpush1.msra.mxu0 0.0
    %155 = vmatprep.subr.mxu0 0.0
    %156 = vmatpush1.msra.mxu0 0.0
    %157 = vmatprep.subr.mxu0 0.0
    %158 = vmatpush1.msra.mxu0 0.0
    %159 = vmatprep.subr.mxu0 0.0
    %160 = vmatpush1.msra.mxu0 0.0
    %161 = vmatprep.subr.mxu0 0.0
    %162 = vmatpush1.msra.mxu0 0.0
    %163 = vmatprep.subr.mxu0 0.0
    %164 = vmatpush1.msra.mxu0 0.0
    %165 = vmatprep.subr.mxu0 0.0
    %166 = vmatpush1.msra.mxu0 0.0
    %167 = vmatprep.subr.mxu0 0.0
    %168 = vmatpush1.msra.mxu0 0.0
    %169 = vmatprep.subr.mxu0 0.0
    %170 = vmatpush1.msra.mxu0 0.0
    %171 = vmatprep.subr.mxu0 0.0
    %172 = vmatpush1.msra.mxu0 0.0
    %173 = vmatprep.subr.mxu0 0.0
    %174 = vmatpush1.msra.mxu0 0.0
    %175 = vmatprep.subr.mxu0 0.0
    %176 = vmatpush1.msra.mxu0 0.0
    %177 = vmatprep.subr.mxu0 0.0
    %178 = vmatpush1.msra.mxu0 0.0
    %179 = vmatprep.subr.mxu0 0.0
    %180 = vmatpush1.msra.mxu0 0.0
    %181 = vmatprep.subr.mxu0 0.0
    %182 = vmatpush1.msra.mxu0 0.0
    %183 = vmatprep.mubr.f32.mxu0 0.0
    %184 = vmatmul.mubr.f32.gmra.mrb[0].mxu0 %v92
    %v185 = vpop.f32.mrb[0].mxu0
    %v186 = vadd.f32 %v53, %v185
    %v187 = vpop.f32.mrb[0].mxu0
    %188 = vmatprep.mubr.f32.mxu0 0.0
    %189 = vmatmul.mubr.f32.gmra.mrb[0].mxu0 %v95
    %v190 = vpop.f32.mrb[0].mxu0
    %v191 = vadd.f32 %v58, %v190
    %v192 = vpop.f32.mrb[0].mxu0
    %193 = vmatprep.mubr.f32.mxu0 0.0
    %194 = vmatmul.mubr.f32.gmra.mrb[0].mxu0 %v98
    %v195 = vpop.f32.mrb[0].mxu0
    %v196 = vadd.f32 %v63, %v195
    %v197 = vpop.f32.mrb[0].mxu0
    %198 = vmatprep.mubr.f32.mxu0 0.0
    %199 = vmatmul.mubr.f32.gmra.mrb[0].mxu0 %v101
    %v200 = vpop.f32.mrb[0].mxu0
    %v201 = vadd.f32 %v68, %v200
    %v202 = vpop.f32.mrb[0].mxu0
    %203 = vmatprep.mubr.f32.mxu0 0.0
    %204 = vmatmul.mubr.f32.gmra.mrb[0].mxu0 %v104
    %v205 = vpop.f32.mrb[0].mxu0
    %v206 = vadd.f32 %v73, %v205
    %v207 = vpop.f32.mrb[0].mxu0
    %208 = vmatprep.mubr.f32.mxu0 0.0
    %209 = vmatmul.mubr.f32.gmra.mrb[0].mxu0 %v107
    %v210 = vpop.f32.mrb[0].mxu0
    %v211 = vadd.f32 %v78, %v210
    %v212 = vpop.f32.mrb[0].mxu0
    %213 = vmatprep.mubr.f32.mxu0 0.0
    %214 = vmatmul.mubr.f32.gmra.mrb[0].mxu0 %v110
    %v215 = vpop.f32.mrb[0].mxu0
    %v216 = vadd.f32 %v83, %v215
    %v217 = vpop.f32.mrb[0].mxu0
    %218 = vmatprep.mubr.f32.mxu0 0.0
    %219 = vmatmul.mubr.f32.gmra.mrb[0].mxu0 %v113
    %v220 = vpop.f32.mrb[0].mxu0
    %v221 = vadd.f32 %v88, %v220
    %v222 = vpop.f32.mrb[0].mxu0
    %223 = vdwg.mxu0
    %v224 = vmax.f32 %v186, 0.0
    %v225 = vmax.f32 %v191, 0.0
    %v226 = vmax.f32 %v196, 0.0
    %v227 = vmax.f32 %v201, 0.0
    %v228 = vmax.f32 %v206, 0.0
    %v229 = vmax.f32 %v211, 0.0
    %v230 = vmax.f32 %v216, 0.0
    %v231 = vmax.f32 %v221, 0.0
    %v232 = vld [vmem:[%s4] sm:$0xff]
    %v233 = vld [vmem:[%s4 + $0x8] sm:$0xff]
    %v234 = vld [vmem:[%s4 + $0x10] sm:$0xff]
    %v235 = vld [vmem:[%s4 + $0x18] sm:$0xff]
    %237 = vset.pattern.permute.xlu0 0
    %238 = vperm.xlu0 %237, %v232
    %v239 = vpop.permute.xlu0 %238
    %242 = vset.pattern.permute.xlu0 0
    %243 = vperm.xlu0 %242, %v233
    %v244 = vpop.permute.xlu0 %243
    %247 = vset.pattern.permute.xlu0 0
    %248 = vperm.xlu0 %247, %v234
    %v249 = vpop.permute.xlu0 %248
    %252 = vset.pattern.permute.xlu0 0
    %253 = vperm.xlu0 %252, %v235
    %v254 = vpop.permute.xlu0 %253
    %vm256 = vcmask 523264
    %v258 = vsel %vm256, %v37, 0
    %v261 = vsel %vm256, %v38, 0
    %v264 = vsel %vm256, %v39, 0
    %v267 = vsel %vm256, %v40, 0
    %269 = vmatprep.subr.mxu0 0.0
    %270 = vmatpush1.msra.mxu0 %v224
    %271 = vmatprep.subr.mxu0 0.0
    %272 = vmatpush1.msra.mxu0 %v225
    %273 = vmatprep.subr.mxu0 0.0
    %274 = vmatpush1.msra.mxu0 %v226
    %275 = vmatprep.subr.mxu0 0.0
    %276 = vmatpush1.msra.mxu0 %v227
    %277 = vmatprep.subr.mxu0 0.0
    %278 = vmatpush1.msra.mxu0 %v228
    %279 = vmatprep.subr.mxu0 0.0
    %280 = vmatpush1.msra.mxu0 %v229
    %281 = vmatprep.subr.mxu0 0.0
    %282 = vmatpush1.msra.mxu0 %v230
    %283 = vmatprep.subr.mxu0 0.0
    %284 = vmatpush1.msra.mxu0 %v231
    %285 = vmatprep.subr.mxu0 0.0
    %286 = vmatpush1.msra.mxu0 0.0
    %287 = vmatprep.subr.mxu0 0.0
    %288 = vmatpush1.msra.mxu0 0.0
    %289 = vmatprep.subr.mxu0 0.0
    %290 = vmatpush1.msra.mxu0 0.0
    %291 = vmatprep.subr.mxu0 0.0
    %292 = vmatpush1.msra.mxu0 0.0
    %293 = vmatprep.subr.mxu0 0.0
    %294 = vmatpush1.msra.mxu0 0.0
    %295 = vmatprep.subr.mxu0 0.0
    %296 = vmatpush1.msra.mxu0 0.0
    %297 = vmatprep.subr.mxu0 0.0
    %298 = vmatpush1.msra.mxu0 0.0
    %299 = vmatprep.subr.mxu0 0.0
    %300 = vmatpush1.msra.mxu0 0.0
    %301 = vmatprep.subr.mxu0 0.0
    %302 = vmatpush1.msra.mxu0 0.0
    %303 = vmatprep.subr.mxu0 0.0
    %304 = vmatpush1.msra.mxu0 0.0
    %305 = vmatprep.subr.mxu0 0.0
    %306 = vmatpush1.msra.mxu0 0.0
    %307 = vmatprep.subr.mxu0 0.0
    %308 = vmatpush1.msra.mxu0 0.0
    %309 = vmatprep.subr.mxu0 0.0
    %310 = vmatpush1.msra.mxu0 0.0
    %311 = vmatprep.subr.mxu0 0.0
    %312 = vmatpush1.msra.mxu0 0.0
    %313 = vmatprep.subr.mxu0 0.0
    %314 = vmatpush1.msra.mxu0 0.0
    %315 = vmatprep.subr.mxu0 0.0
    %316 = vmatpush1.msra.mxu0 0.0
    %317 = vmatprep.subr.mxu0 0.0
    %318 = vmatpush1.msra.mxu0 0.0
    %319 = vmatprep.subr.mxu0 0.0
    %320 = vmatpush1.msra.mxu0 0.0
    %321 = vmatprep.subr.mxu0 0.0
    %322 = vmatpush1.msra.mxu0 0.0
    %323 = vmatprep.subr.mxu0 0.0
    %324 = vmatpush1.msra.mxu0 0.0
    %325 = vmatprep.subr.mxu0 0.0
    %326 = vmatpush1.msra.mxu0 0.0
    %327 = vmatprep.subr.mxu0 0.0
    %328 = vmatpush1.msra.mxu0 0.0
    %329 = vmatprep.subr.mxu0 0.0
    %330 = vmatpush1.msra.mxu0 0.0
    %331 = vmatprep.subr.mxu0 0.0
    %332 = vmatpush1.msra.mxu0 0.0
    %333 = vmatprep.mubr.f32.mxu0 0.0
    %334 = vmatmul.mubr.f32.gmra.mrb[0].mxu0 %v258
    %v335 = vpop.f32.mrb[0].mxu0
    %v336 = vadd.f32 %v239, %v335
    %v337 = vpop.f32.mrb[0].mxu0
    %338 = vmatprep.mubr.f32.mxu0 0.0
    %339 = vmatmul.mubr.f32.gmra.mrb[0].mxu0 %v261
    %v340 = vpop.f32.mrb[0].mxu0
    %v341 = vadd.f32 %v244, %v340
    %v342 = vpop.f32.mrb[0].mxu0
    %343 = vmatprep.mubr.f32.mxu0 0.0
    %344 = vmatmul.mubr.f32.gmra.mrb[0].mxu0 %v264
    %v345 = vpop.f32.mrb[0].mxu0
    %v346 = vadd.f32 %v249, %v345
    %v347 = vpop.f32.mrb[0].mxu0
    %348 = vmatprep.mubr.f32.mxu0 0.0
    %349 = vmatmul.mubr.f32.gmra.mrb[0].mxu0 %v267
    %v350 = vpop.f32.mrb[0].mxu0
    %v351 = vadd.f32 %v254, %v350
    %v352 = vpop.f32.mrb[0].mxu0
    %353 = vdwg.mxu0
    %v354 = vmax.f32 %v336, 0.0
    %v355 = vmax.f32 %v341, 0.0
    %v356 = vmax.f32 %v346, 0.0
    %v357 = vmax.f32 %v351, 0.0
    %s358 = sld [smem:[#allocation2]]
    %v359 = vstv %s358
    %vm360 = vcmask 261120
    %v362 = vsel %vm360, %v41, 0
    %364 = vmatprep.subr.mxu0 0.0
    %365 = vmatpush1.msra.mxu0 %v354
    %366 = vmatprep.subr.mxu0 0.0
    %367 = vmatpush1.msra.mxu0 %v355
    %368 = vmatprep.subr.mxu0 0.0
    %369 = vmatpush1.msra.mxu0 %v356
    %370 = vmatprep.subr.mxu0 0.0
    %371 = vmatpush1.msra.mxu0 %v357
    %372 = vmatprep.subr.mxu0 0.0
    %373 = vmatpush1.msra.mxu0 0.0
    %374 = vmatprep.subr.mxu0 0.0
    %375 = vmatpush1.msra.mxu0 0.0
    %376 = vmatprep.subr.mxu0 0.0
    %377 = vmatpush1.msra.mxu0 0.0
    %378 = vmatprep.subr.mxu0 0.0
    %379 = vmatpush1.msra.mxu0 0.0
    %380 = vmatprep.subr.mxu0 0.0
    %381 = vmatpush1.msra.mxu0 0.0
    %382 = vmatprep.subr.mxu0 0.0
    %383 = vmatpush1.msra.mxu0 0.0
    %384 = vmatprep.subr.mxu0 0.0
    %385 = vmatpush1.msra.mxu0 0.0
    %386 = vmatprep.subr.mxu0 0.0
    %387 = vmatpush1.msra.mxu0 0.0
    %388 = vmatprep.subr.mxu0 0.0
    %389 = vmatpush1.msra.mxu0 0.0
    %390 = vmatprep.subr.mxu0 0.0
    %391 = vmatpush1.msra.mxu0 0.0
    %392 = vmatprep.subr.mxu0 0.0
    %393 = vmatpush1.msra.mxu0 0.0
    %394 = vmatprep.subr.mxu0 0.0
    %395 = vmatpush1.msra.mxu0 0.0
    %396 = vmatprep.subr.mxu0 0.0
    %397 = vmatpush1.msra.mxu0 0.0
    %398 = vmatprep.subr.mxu0 0.0
    %399 = vmatpush1.msra.mxu0 0.0
    %400 = vmatprep.subr.mxu0 0.0
    %401 = vmatpush1.msra.mxu0 0.0
    %402 = vmatprep.subr.mxu0 0.0
    %403 = vmatpush1.msra.mxu0 0.0
    %404 = vmatprep.subr.mxu0 0.0
    %405 = vmatpush1.msra.mxu0 0.0
    %406 = vmatprep.subr.mxu0 0.0
    %407 = vmatpush1.msra.mxu0 0.0
    %408 = vmatprep.subr.mxu0 0.0
    %409 = vmatpush1.msra.mxu0 0.0
    %410 = vmatprep.subr.mxu0 0.0
    %411 = vmatpush1.msra.mxu0 0.0
    %412 = vmatprep.subr.mxu0 0.0
    %413 = vmatpush1.msra.mxu0 0.0
    %414 = vmatprep.subr.mxu0 0.0
    %415 = vmatpush1.msra.mxu0 0.0
    %416 = vmatprep.subr.mxu0 0.0
    %417 = vmatpush1.msra.mxu0 0.0
    %418 = vmatprep.subr.mxu0 0.0
    %419 = vmatpush1.msra.mxu0 0.0
    %420 = vmatprep.subr.mxu0 0.0
    %421 = vmatpush1.msra.mxu0 0.0
    %422 = vmatprep.subr.mxu0 0.0
    %423 = vmatpush1.msra.mxu0 0.0
    %424 = vmatprep.subr.mxu0 0.0
    %425 = vmatpush1.msra.mxu0 0.0
    %426 = vmatprep.subr.mxu0 0.0
    %427 = vmatpush1.msra.mxu0 0.0
    %428 = vmatprep.mubr.f32.mxu0 0.0
    %429 = vmatmul.mubr.f32.gmra.mrb[0].mxu0 %v362
    %v430 = vpop.f32.mrb[0].mxu0
    %v431 = vadd.f32 %v359, %v430
    %v432 = vpop.f32.mrb[0].mxu0
    %433 = vdwg.mxu0
    %vm434 = vcmask 57344
    %435 = vst.msk [vmem:[#allocation3] sm:$0x1] %vm434, %v431
    // Predicated region
    $region30: #{tpu_custom_call.1} parent=1 // pred_check
      _
    $region31: #{tpu_custom_call.1} parent=1 // pred_check_branch
      %437 = sbr.rel (0) target = $region33
    $region32: #{tpu_custom_call.1} parent=1 // pred_region
      %s439 = ssub.s32 16, 16
      %440 = vsyncadd [#allocation4], %s439
      %s442 = sshll.u32 [#allocation3], 4
      %s443 = int_to_ptr.vmem [resolvable:$true] %s442
      %445 = dma.vmem_to_hbm [thread:$0]  %s443, 16, %s7, [#allocation4]
    $region33: #{tpu_custom_call.1} parent=1 // pred_fallthru
      _
    // Predicated region
    $region34: #{tpu_custom_call.1} parent=1 // pred_check
      _
    $region35: #{tpu_custom_call.1} parent=1 // pred_check_branch
      %447 = sbr.rel (0) target = $region37
    $region36: #{tpu_custom_call.1} parent=1 // pred_region
      %448 = dma.done [#allocation4], 16
    $region37: #{tpu_custom_call.1} parent=1 // pred_fallthru
      _
    %449 = vsyncpa [#allocation4], 1

</llo_original>
